<compile_context>
chip_gen: v7x
topology: tpu7x:2x2x1
jax: 0.10.0
libtpu: 0.0.40
codegen_flags: <defaults>
</compile_context>

<pallas_src>
import functools

import jax
import jax.numpy as jnp
from jax.experimental import pallas as pl
from jax.experimental.pallas import tpu as pltpu


def encoder_kernel(x_ref, w_ref, b_ref, eps_ref, z_ref):
    latent = z_ref.shape[-1]

    # ---- inference network (Linear): one fused lane-dense matmul on the MXU ----
    x = x_ref[...].astype(jnp.bfloat16)                  # in-kernel downcast (VPU, free)
    inf = jnp.dot(x, w_ref[...], preferred_element_type=jnp.float32)   # (bm, 2L) f32
    inf = inf + b_ref[...]

    # ---- torch.chunk(inf, 2, dim=-1): lane-aligned split of the f32 result ----
    loc = inf[:, :latent]
    scale_arg = inf[:, latent:]

    # ---- softplus (nn.Softplus), numerically-stable single-exp form ----
    scale = jnp.maximum(scale_arg, 0.0) + jnp.log1p(jnp.exp(-jnp.abs(scale_arg)))

    # ---- reparameterized sample: z = loc + scale * eps ----
    z_ref[...] = (loc + scale * eps_ref[...]).astype(z_ref.dtype)


def prepare_encoder_params(w, b):
    """One-time parameter prep (hoisted out of the per-step hot path)."""
    return w.astype(jnp.bfloat16), b.reshape(1, -1).astype(jnp.float32)


@functools.partial(jax.jit, static_argnames=("block_m",))
def encoder_forward(x, w_bf16, b, eps, *, block_m=1024):
    """x: (B, F) f32, w_bf16: (F, 2L) bf16, b: (1, 2L) f32, eps: (B, L) f32 -> (B, L) f32."""
    batch, feat = x.shape
    out_dim = w_bf16.shape[1]
    latent = out_dim // 2

    # Batch tiling: whole batch in one block when tiny; otherwise large tiles,
    # but at least 2 grid steps so the "parallel" axis can shard across the two
    # TensorCores on v7x. bm is a multiple of 8 (sublane) unless it equals batch.
    if batch <= 8:
        bm = batch
    else:
        half = ((-(-batch // 2)) + 7) // 8 * 8           # round_up(ceil(batch/2), 8)
        bm = min(block_m, half)
    num_blocks = pl.cdiv(batch, bm)   # ragged last block -> masked edge, no jnp.pad

    # Explicit VMEM budget (double-buffered x/eps/z tiles + resident w/b) with
    # 2x headroom; keeps large tiles compiling on v5e's 16 MiB default scoped
    # VMEM without overshooting v7x's 64 MiB physical VMEM.
    vmem_needed = (
        2 * bm * feat * 2          # x tile, bf16 in VMEM after in-kernel cast is f32 src: keep f32 est below
        + 2 * bm * feat * 4        # x tile, f32, double-buffered
        + 2 * feat * out_dim * 2   # W, bf16 (resident, default double-buffered)
        + 2 * out_dim * 4          # b, f32
        + 2 * bm * latent * 4      # eps tile, f32, double-buffered
        + 2 * bm * latent * 4      # z tile, f32, double-buffered
    )
    vmem_limit = int(min(max(2 * vmem_needed + (1 << 20), 16 << 20), 48 << 20))

    return pl.pallas_call(
        encoder_kernel,
        out_shape=jax.ShapeDtypeStruct((batch, latent), jnp.float32),
        grid=(num_blocks,),
        in_specs=[
            pl.BlockSpec((bm, feat), lambda i: (i, 0)),        # x tile (f32, cast in-kernel)
            pl.BlockSpec((feat, out_dim), lambda i: (0, 0)),   # W (bf16, resident)
            pl.BlockSpec((1, out_dim), lambda i: (0, 0)),      # b (resident)
            pl.BlockSpec((bm, latent), lambda i: (i, 0)),      # eps tile
        ],
        out_specs=pl.BlockSpec((bm, latent), lambda i: (i, 0)),
        compiler_params=pltpu.CompilerParams(
            dimension_semantics=("parallel",),
            vmem_limit_bytes=vmem_limit,
        ),
    )(x, w_bf16, b, eps)


if __name__ == "__main__":
    B, F, L = 8, 128, 128   # batch, input features, latent dim (net output is 2L)

    key = jax.random.PRNGKey(0)
    kx, kw, kb, ke = jax.random.split(key, 4)

    # Deterministic synthetic parameters for the inference network (Linear F -> 2L).
    x = jax.random.normal(kx, (B, F), dtype=jnp.float32)
    w = jax.random.normal(kw, (F, 2 * L), dtype=jnp.float32) * (1.0 / jnp.sqrt(F))
    b = jax.random.normal(kb, (1, 2 * L), dtype=jnp.float32) * 0.01
    eps = jax.random.normal(ke, (B, L), dtype=jnp.float32)    # torch.randn(loc.shape)

    w_bf, b_f32 = prepare_encoder_params(w, b)                # one-time, outside hot path
    z = encoder_forward(x, w_bf, b_f32, eps)
    jax.block_until_ready(z)

    # Pure-JAX reference of the Encoder forward pass (matching bf16 input rounding,
    # f32 accumulate).
    inf_ref = jnp.dot(x.astype(jnp.bfloat16).astype(jnp.float32),
                      w_bf.astype(jnp.float32)) + b_f32
    loc_r, scale_arg_r = inf_ref[:, :L], inf_ref[:, L:]
    z_ref = loc_r + jax.nn.softplus(scale_arg_r) * eps

    assert z.shape == (B, L) and z.dtype == jnp.float32
    assert bool(jnp.all(jnp.isfinite(z)))
    assert bool(jnp.allclose(z, z_ref, atol=1e-2, rtol=1e-2)), "mismatch vs reference"
    print("KERNEL_OK")
</pallas_src>

<mosaic_0001>
module attributes {stable_mosaic.version = 11 : i64} {
  func.func @encoder_kernel(%arg0: i32, %arg1: memref<8x128xf32, #tpu.memory_space<vmem>>, %arg2: memref<128x256xbf16, #tpu.memory_space<vmem>>, %arg3: memref<1x256xf32, #tpu.memory_space<vmem>>, %arg4: memref<8x128xf32, #tpu.memory_space<vmem>>, %arg5: memref<8x128xf32, #tpu.memory_space<vmem>>) attributes {dimension_semantics = [#tpu.dimension_semantics<parallel>], iteration_bounds = array<i64: 1>, scalar_prefetch = 0 : i64, scratch_operands = 0 : i64, tpu.core_type = #tpu.core_type<tc>, window_params = [{transform_indices = @transform_0, window_bounds = array<i64: 8, 128>}, {pipeline_mode = #tpu.pipeline_mode<synchronous>, transform_indices = @transform_1, window_bounds = array<i64: 128, 256>}, {pipeline_mode = #tpu.pipeline_mode<synchronous>, transform_indices = @transform_2, window_bounds = array<i64: 1, 256>}, {transform_indices = @transform_3, window_bounds = array<i64: 8, 128>}, {transform_indices = @transform_4, window_bounds = array<i64: 8, 128>}]} {
    %c0 = arith.constant 0 : index
    %c0_0 = arith.constant 0 : index
    %0 = vector.load %arg1[%c0, %c0_0] : memref<8x128xf32, #tpu.memory_space<vmem>>, vector<8x128xf32>
    %1 = arith.truncf %0 : vector<8x128xf32> to vector<8x128xbf16>
    %c0_1 = arith.constant 0 : index
    %c0_2 = arith.constant 0 : index
    %2 = vector.load %arg2[%c0_1, %c0_2] : memref<128x256xbf16, #tpu.memory_space<vmem>>, vector<128x256xbf16>
    %cst = arith.constant dense<0.000000e+00> : vector<8x256xf32>
    %3 = tpu.matmul %1, %2, %cst {dimension_numbers = #tpu.dot_dimension_numbers<[1], [0], [0], [1], [0, 0, 1, 1], [], []>} : vector<8x128xbf16>, vector<128x256xbf16>, vector<8x256xf32> -> vector<8x256xf32>
    %c0_3 = arith.constant 0 : index
    %c0_4 = arith.constant 0 : index
    %4 = vector.load %arg3[%c0_3, %c0_4] : memref<1x256xf32, #tpu.memory_space<vmem>>, vector<1x256xf32>
    %5 = vector.broadcast %4 : vector<1x256xf32> to vector<8x256xf32>
    %6 = arith.addf %3, %5 : vector<8x256xf32>
    %7 = vector.extract_strided_slice %6 {offsets = [0, 0], sizes = [8, 128], strides = [1, 1]} : vector<8x256xf32> to vector<8x128xf32>
    %8 = vector.extract_strided_slice %6 {offsets = [0, 128], sizes = [8, 128], strides = [1, 1]} : vector<8x256xf32> to vector<8x128xf32>
    %cst_5 = arith.constant 0.000000e+00 : f32
    %9 = vector.broadcast %cst_5 : f32 to vector<8x128xf32>
    %10 = arith.maximumf %8, %9 : vector<8x128xf32>
    %11 = math.absf %8 : vector<8x128xf32>
    %cst_6 = arith.constant 0.000000e+00 : f32
    %12 = vector.broadcast %cst_6 : f32 to vector<8x128xf32>
    %13 = arith.subf %12, %11 : vector<8x128xf32>
    %14 = math.exp %13 : vector<8x128xf32>
    %15 = math.log1p %14 : vector<8x128xf32>
    %16 = arith.addf %10, %15 : vector<8x128xf32>
    %c0_7 = arith.constant 0 : index
    %c0_8 = arith.constant 0 : index
    %17 = vector.load %arg4[%c0_7, %c0_8] : memref<8x128xf32, #tpu.memory_space<vmem>>, vector<8x128xf32>
    %18 = arith.mulf %16, %17 : vector<8x128xf32>
    %19 = arith.addf %7, %18 : vector<8x128xf32>
    %c0_9 = arith.constant 0 : index
    %c0_10 = arith.constant 0 : index
    %20 = vector.load %arg5[%c0_9, %c0_10] : memref<8x128xf32, #tpu.memory_space<vmem>>, vector<8x128xf32>
    tpu.vector_store %arg5[%c0_9, %c0_10], %19 {strides = array<i32>} : memref<8x128xf32, #tpu.memory_space<vmem>>, vector<8x128xf32>,
    return
  }
  func.func @transform_0(%arg0: i32) -> (i32, i32) {
    %c0_i32 = arith.constant 0 : i32
    %c0_i32_0 = arith.constant 0 : i32
    return %arg0, %c0_i32 : i32, i32
  }
  func.func @transform_1(%arg0: i32) -> (i32, i32) {
    %c0_i32 = arith.constant 0 : i32
    %c0_i32_0 = arith.constant 0 : i32
    %c0_i32_1 = arith.constant 0 : i32
    return %c0_i32, %c0_i32_0 : i32, i32
  }
  func.func @transform_2(%arg0: i32) -> (i32, i32) {
    %c0_i32 = arith.constant 0 : i32
    %c0_i32_0 = arith.constant 0 : i32
    %c0_i32_1 = arith.constant 0 : i32
    return %c0_i32, %c0_i32_0 : i32, i32
  }
  func.func @transform_3(%arg0: i32) -> (i32, i32) {
    %c0_i32 = arith.constant 0 : i32
    %c0_i32_0 = arith.constant 0 : i32
    return %arg0, %c0_i32 : i32, i32
  }
  func.func @transform_4(%arg0: i32) -> (i32, i32) {
    %c0_i32 = arith.constant 0 : i32
    %c0_i32_0 = arith.constant 0 : i32
    return %arg0, %c0_i32 : i32, i32
  }
}

</mosaic_0001>

<llo_original>
// kernel: encoder_forward.1
$region0: #{encoder_forward.1}
  #allocation0 [shape = 'u32[]', space=smem, size = 0x4, offset = 0x4, fixed_abs, tag = 'smem constant byte address 0x4 - core index']
  #allocation1 [shape = 'u32[144,128]{1,0:T(1,128)}', space=vmem, size = 0x12000, scoped, tag = 'internal scratch']
  %s0 = inlined_call_operand.hbm [shape: f32[8,128], index: 0, kind: input, shape index: {}]
  %s1 = inlined_call_operand.hbm [shape: bf16[128,256], index: 1, kind: input, shape index: {}]
  %s2 = inlined_call_operand.vmem [shape: f32[1,256], index: 2, kind: input, shape index: {}]
  %s3 = inlined_call_operand.vmem [shape: f32[8,128], index: 3, kind: input, shape index: {}]
  %s4 = inlined_call_operand.hbm [shape: f32[8,128], index: 4, kind: output, shape index: {}]
  %s5 = sld [smem:[#allocation0]]
  $region34: #{encoder_forward.1} parent=0
    _
  %s7 = ssub.s32 1, %s5
  %s8 = scalar_select 0, %s7, %s5
  $region1: #{encoder_forward.1} parent=0
    #allocation2 [shape = 'u8[4096]{0}', space=vmem, size = 0x1000, scoped, tag = 'input window, operand 0, single buffered']
    #allocation3 [shape = 's32[1]{0}', space=sflag, size = 0x4, scoped, tag = 'scoped memory for encoder_forward.1']
    #allocation4 [shape = 's32[1]{0}', space=sflag, size = 0x4, scoped, tag = 'scoped memory for encoder_forward.1']
    #allocation5 [shape = 'u8[65536]{0}', space=vmem, size = 0x10000, scoped, tag = 'input window, operand 1, single buffered']
    #allocation6 [shape = 's32[1]{0}', space=sflag, size = 0x4, scoped, tag = 'scoped memory for encoder_forward.1']
    #allocation7 [shape = 'u8[4096]{0}', space=vmem, size = 0x1000, scoped, tag = 'output window, operand 0, single buffered']
    %9 = vsyncpa [#allocation3], 0
    %10 = vsyncpa [#allocation6], 0
    %11 = vsyncpa [#allocation4], 0
    // Predicated region
    $region2: #{encoder_forward.1} parent=1 // pred_check
      _
    $region3: #{encoder_forward.1} parent=1 // pred_check_branch
      %13 = sbr.rel (0) target = $region5
    $region4: #{encoder_forward.1} parent=1 // pred_region
      %s15 = ssub.s32 128, 128
      %16 = vsyncadd [#allocation3], %s15
      %s18 = sshll.u32 [#allocation2], 4
      %s19 = int_to_ptr.vmem [resolvable:$true] %s18
      %21 = dma.hbm_to_vmem [thread:$0]  %s0, 128, %s19, [#allocation3]
    $region5: #{encoder_forward.1} parent=1 // pred_fallthru
      _
    // Predicated region
    $region6: #{encoder_forward.1} parent=1 // pred_check
      _
    $region7: #{encoder_forward.1} parent=1 // pred_check_branch
      %23 = sbr.rel (0) target = $region9
    $region8: #{encoder_forward.1} parent=1 // pred_region
      %s25 = ssub.s32 2048, 2048
      %26 = vsyncadd [#allocation6], %s25
      %s27 = sshll.u32 [#allocation5], 4
      %s28 = int_to_ptr.vmem [resolvable:$true] %s27
      %33 = dma.hbm_to_vmem [thread:$0]  %s1, 2048, %s28, [#allocation6], 128, 128, 8
    $region9: #{encoder_forward.1} parent=1 // pred_fallthru
      _
    // Predicated region
    $region10: #{encoder_forward.1} parent=1 // pred_check
      _
    $region11: #{encoder_forward.1} parent=1 // pred_check_branch
      %35 = sbr.rel (0) target = $region13
    $region12: #{encoder_forward.1} parent=1 // pred_region
      _
    $region13: #{encoder_forward.1} parent=1 // pred_fallthru
      _
    // Predicated region
    $region14: #{encoder_forward.1} parent=1 // pred_check
      _
    $region15: #{encoder_forward.1} parent=1 // pred_check_branch
      %37 = sbr.rel (0) target = $region17
    $region16: #{encoder_forward.1} parent=1 // pred_region
      _
    $region17: #{encoder_forward.1} parent=1 // pred_fallthru
      _
    // Predicated region
    $region18: #{encoder_forward.1} parent=1 // pred_check
      _
    $region19: #{encoder_forward.1} parent=1 // pred_check_branch
      %39 = sbr.rel (0) target = $region21
    $region20: #{encoder_forward.1} parent=1 // pred_region
      %40 = dma.done [#allocation3], 128
    $region21: #{encoder_forward.1} parent=1 // pred_fallthru
      _
    // Predicated region
    $region22: #{encoder_forward.1} parent=1 // pred_check
      _
    $region23: #{encoder_forward.1} parent=1 // pred_check_branch
      %42 = sbr.rel (0) target = $region25
    $region24: #{encoder_forward.1} parent=1 // pred_region
      %43 = dma.done [#allocation6], 2048
    $region25: #{encoder_forward.1} parent=1 // pred_fallthru
      _
    %v45 = vld [vmem:[#allocation2] sm:$0xff]
    %v46 = vpack.c.bf16 %v45, %v45
    %v47 = vld [vmem:[#allocation5] sm:$0xff]
    %v48 = vld [vmem:[#allocation5 + $0x8] sm:$0xff]
    %v49 = vld [vmem:[#allocation5 + $0x10] sm:$0xff]
    %v50 = vld [vmem:[#allocation5 + $0x18] sm:$0xff]
    %v51 = vld [vmem:[#allocation5 + $0x20] sm:$0xff]
    %v52 = vld [vmem:[#allocation5 + $0x28] sm:$0xff]
    %v53 = vld [vmem:[#allocation5 + $0x30] sm:$0xff]
    %v54 = vld [vmem:[#allocation5 + $0x38] sm:$0xff]
    %v55 = vld [vmem:[#allocation5 + $0x40] sm:$0xff]
    %v56 = vld [vmem:[#allocation5 + $0x48] sm:$0xff]
    %v57 = vld [vmem:[#allocation5 + $0x50] sm:$0xff]
    %v58 = vld [vmem:[#allocation5 + $0x58] sm:$0xff]
    %v59 = vld [vmem:[#allocation5 + $0x60] sm:$0xff]
    %v60 = vld [vmem:[#allocation5 + $0x68] sm:$0xff]
    %v61 = vld [vmem:[#allocation5 + $0x70] sm:$0xff]
    %v62 = vld [vmem:[#allocation5 + $0x78] sm:$0xff]
    %v63 = vld [vmem:[%s2] sm:$0x3]
    %v65 = vlaneseq
    %v66 = vshrl.u32 %v65, 7
    %v67 = vsub.s32 0, %v66
    %v68 = vrot.slane %v63, %v67
    %v69 = vlaneseq
    %v70 = vshrl.u32 %v69, 7
    %v71 = vsub.s32 1, %v70
    %v72 = vrot.slane %v63, %v71
    %v91 = vunpack.c.l.b16 %v47
    %v92 = vunpack.c.h.b16 %v47
    %v93 = vunpack.c.l.b16 %v48
    %v94 = vunpack.c.h.b16 %v48
    %v95 = vunpack.c.l.b16 %v49
    %v96 = vunpack.c.h.b16 %v49
    %v97 = vunpack.c.l.b16 %v50
    %v98 = vunpack.c.h.b16 %v50
    %v99 = vunpack.c.l.b16 %v51
    %v100 = vunpack.c.h.b16 %v51
    %v101 = vunpack.c.l.b16 %v52
    %v102 = vunpack.c.h.b16 %v52
    %v103 = vunpack.c.l.b16 %v53
    %v104 = vunpack.c.h.b16 %v53
    %v105 = vunpack.c.l.b16 %v54
    %v106 = vunpack.c.h.b16 %v54
    %v107 = vunpack.c.l.b16 %v55
    %v108 = vunpack.c.h.b16 %v55
    %v109 = vunpack.c.l.b16 %v56
    %v110 = vunpack.c.h.b16 %v56
    %v111 = vunpack.c.l.b16 %v57
    %v112 = vunpack.c.h.b16 %v57
    %v113 = vunpack.c.l.b16 %v58
    %v114 = vunpack.c.h.b16 %v58
    %v115 = vunpack.c.l.b16 %v59
    %v116 = vunpack.c.h.b16 %v59
    %v117 = vunpack.c.l.b16 %v60
    %v118 = vunpack.c.h.b16 %v60
    %v119 = vunpack.c.l.b16 %v61
    %v120 = vunpack.c.h.b16 %v61
    %v121 = vunpack.c.l.b16 %v62
    %v122 = vunpack.c.h.b16 %v62
    %v123 = vpack.c.b16 %v93, %v91
    %v124 = vpack.c.b16 %v94, %v92
    %v125 = vpack.c.b16 %v97, %v95
    %v126 = vpack.c.b16 %v98, %v96
    %v127 = vpack.c.b16 %v101, %v99
    %v128 = vpack.c.b16 %v102, %v100
    %v129 = vpack.c.b16 %v105, %v103
    %v130 = vpack.c.b16 %v106, %v104
    %v131 = vpack.c.b16 %v109, %v107
    %v132 = vpack.c.b16 %v110, %v108
    %v133 = vpack.c.b16 %v113, %v111
    %v134 = vpack.c.b16 %v114, %v112
    %v135 = vpack.c.b16 %v117, %v115
    %v136 = vpack.c.b16 %v118, %v116
    %v137 = vpack.c.b16 %v121, %v119
    %v138 = vpack.c.b16 %v122, %v120
    %155 = vmatprep.subr.bf16.mxu0 %v124
    %156 = vmatpush1.bf16.msra.mxu0 %v123
    %157 = vmatprep.subr.bf16.mxu0 %v126
    %158 = vmatpush1.bf16.msra.mxu0 %v125
    %159 = vmatprep.subr.bf16.mxu0 %v128
    %160 = vmatpush1.bf16.msra.mxu0 %v127
    %161 = vmatprep.subr.bf16.mxu0 %v130
    %162 = vmatpush1.bf16.msra.mxu0 %v129
    %163 = vmatprep.subr.bf16.mxu0 %v132
    %164 = vmatpush1.bf16.msra.mxu0 %v131
    %165 = vmatprep.subr.bf16.mxu0 %v134
    %166 = vmatpush1.bf16.msra.mxu0 %v133
    %167 = vmatprep.subr.bf16.mxu0 %v136
    %168 = vmatpush1.bf16.msra.mxu0 %v135
    %169 = vmatprep.subr.bf16.mxu0 %v138
    %170 = vmatpush1.bf16.msra.mxu0 %v137
    %171 = vmatprep.subr.bf16.mxu0 0
    %172 = vmatpush1.bf16.msra.mxu0 0
    %173 = vmatprep.subr.bf16.mxu0 0
    %174 = vmatpush1.bf16.msra.mxu0 0
    %175 = vmatprep.subr.bf16.mxu0 0
    %176 = vmatpush1.bf16.msra.mxu0 0
    %177 = vmatprep.subr.bf16.mxu0 0
    %178 = vmatpush1.bf16.msra.mxu0 0
    %179 = vmatprep.subr.bf16.mxu0 0
    %180 = vmatpush1.bf16.msra.mxu0 0
    %181 = vmatprep.subr.bf16.mxu0 0
    %182 = vmatpush1.bf16.msra.mxu0 0
    %183 = vmatprep.subr.bf16.mxu0 0
    %184 = vmatpush1.bf16.msra.mxu0 0
    %185 = vmatprep.subr.bf16.mxu0 0
    %186 = vmatpush1.bf16.msra.mxu0 0
    %187 = vmatprep.mubr.bf16.mxu0 0
    %188 = vmatmul.mubr.bf16.gmra.mrb[0].mxu0 %v46
    %v189 = vpop.f32.mrb[0].mxu0
    %v190 = vadd.f32 %v68, %v189
    %v191 = vpop.f32.mrb[0].mxu0
    %v192 = vadd.f32 %v72, %v191
    %v193 = vpop.f32.mrb[0].mxu0
    %v194 = vpop.f32.mrb[0].mxu0
    %195 = vdwg.mxu0
    %v196 = vmax.f32 %v192, 0.0
    %v197 = vand.u32 2147483647, %v192
    %v198 = vsub.f32 0.0, %v197
    %v199 = vmul.f32 %v198, 1.442695
    %v200 = vpow.pop %v199
    %v201 = vadd.f32 %v200, 1.0
    %v202 = vlog2.pop %v201
    %v203 = vmul.f32 %v202, 0.6931472
    %v204 = vmul.f32 -0.5, %v200
    %v205 = vadd.f32 %v204, 1.0
    %v206 = vmul.f32 %v205, %v200
    %v207 = vand.u32 2147483647, %v200
    %vm208 = vcmp.lt.f32.partialorder %v207, 0.0004427343
    %v209 = vsel %vm208, %v206, %v203
    %v210 = vadd.f32 %v196, %v209
    %v211 = vld [vmem:[%s3] sm:$0xff]
    %v212 = vmul.f32 %v210, %v211
    %v213 = vadd.f32 %v190, %v212
    %214 = vst [vmem:[#allocation7] sm:$0xff] %v213
    // Predicated region
    $region26: #{encoder_forward.1} parent=1 // pred_check
      _
    $region27: #{encoder_forward.1} parent=1 // pred_check_branch
      %216 = sbr.rel (0) target = $region29
    $region28: #{encoder_forward.1} parent=1 // pred_region
      %s218 = ssub.s32 128, 128
      %219 = vsyncadd [#allocation4], %s218
      %s221 = sshll.u32 [#allocation7], 4
      %s222 = int_to_ptr.vmem [resolvable:$true] %s221
      %224 = dma.vmem_to_hbm [thread:$0]  %s222, 128, %s4, [#allocation4]
    $region29: #{encoder_forward.1} parent=1 // pred_fallthru
      _
    // Predicated region
    $region30: #{encoder_forward.1} parent=1 // pred_check
      _
    $region31: #{encoder_forward.1} parent=1 // pred_check_branch
      %226 = sbr.rel (0) target = $region33
    $region32: #{encoder_forward.1} parent=1 // pred_region
      %227 = dma.done [#allocation4], 128
    $region33: #{encoder_forward.1} parent=1 // pred_fallthru
      _
    %228 = vsyncpa [#allocation3], 1
    %229 = vsyncpa [#allocation6], 1
    %230 = vsyncpa [#allocation4], 1

</llo_original>
